<compile_context>
chip_gen: v7x
topology: tpu7x:2x2x1
jax: 0.10.0
libtpu: 0.0.40
codegen_flags: <defaults>
</compile_context>

<pallas_src>
import functools

import jax
import jax.numpy as jnp
from jax.experimental import pallas as pl
from jax.experimental.pallas import tpu as pltpu

BN_EPS = 1e-5
LANE = 128
SUBLANE = 8


def _round_up(n, m):
    return ((n + m - 1) // m) * m


# ---------------------------------------------------------------------------
# Pass 1: per-tile partial sums for BatchNorm statistics.
#   partial block (1, 2H) f32 = [sum(h), sum(h*h)] over the (masked) tile rows.
# ---------------------------------------------------------------------------
def _bn_stats_kernel(x_ref, w1_ref, part_ref, *, true_b, matmul_dtype):
    tb = x_ref.shape[0]
    # x is NOT pre-padded in HBM: the boundary DMA of the last tile is clipped and
    # the tail of the VMEM window is undefined, so mask tail rows before the matmul.
    row = jax.lax.broadcasted_iota(jnp.int32, x_ref.shape, 0)
    valid = (row + pl.program_id(0) * tb) < true_b
    x = jnp.where(valid, x_ref[...], 0.0).astype(matmul_dtype)
    h = jnp.dot(x, w1_ref[...], preferred_element_type=jnp.float32)      # (TB, H) f32
    hh = jnp.concatenate([h, h * h], axis=-1)                            # (TB, 2H) lane-dense
    part_ref[...] = jnp.sum(hh, axis=0, keepdims=True)                   # (1, 2H)


# ---------------------------------------------------------------------------
# Pass 2: full forward for one batch tile (BN folded into scale/shift),
#         output produced transposed as (n_out, tb).
# ---------------------------------------------------------------------------
def _linnet_fwd_kernel(x_ref, w1_ref, scale_ref, shift_ref, w2t_ref, b2_ref, o_ref,
                       *, matmul_dtype):
    x = x_ref[...].astype(matmul_dtype)                                   # cast in-kernel
    h = jnp.dot(x, w1_ref[...], preferred_element_type=jnp.float32)       # (TB, H) f32
    # BatchNorm normalize+affine fused into a single FMA, then ReLU (f32 VPU math).
    h = jnp.maximum(h * scale_ref[...] + shift_ref[...], 0.0)
    # Second layer computed transposed: (n_out, H) @ (H, TB) -> (n_out, TB).
    # (q @ k.T-style transposed operand; MXU handles it, XLU has huge slack anyway.)
    y = jnp.dot(w2t_ref[...], h.astype(w2t_ref.dtype).T,
                preferred_element_type=jnp.float32)
    o_ref[...] = jnp.maximum(y + b2_ref[...], 0.0).astype(o_ref.dtype)    # (n_out, TB)


@functools.partial(jax.jit, static_argnames=("tb", "matmul_dtype", "out_dtype"))
def linnet_forward(x, w1, g1, b1, w2, b2, *, tb=None,
                   matmul_dtype=jnp.float32, out_dtype=jnp.float32):
    B, d_in = x.shape
    d_hid = w1.shape[1]
    n_out = w2.shape[1]

    # Batch tile:
    #  * multiple of 128 so the transposed (n_out, tb) output block is lane-dense,
    #  * >= 2 roughly balanced tiles when B allows (v7x: one tile per TensorCore),
    #  * capped at 4096 (VMEM use stays ~1.3 MiB double-buffered at f32).
    if tb is None:
        if B <= LANE:
            tb = LANE
        else:
            tb = min(4096, _round_up(pl.cdiv(B, 2), LANE))
    tb = _round_up(tb, LANE)
    n_tiles = pl.cdiv(B, tb)
    b_pad = n_tiles * tb

    # Only the tiny layer parameters are massaged in XLA; x is passed untouched
    # (no pad / cast HBM round-trip).
    w1m = w1.astype(matmul_dtype)                                  # (d_in, d_hid)
    w2t = w2.T.astype(matmul_dtype)                                # (n_out, d_hid)
    b2c = b2.reshape(n_out, 1).astype(jnp.float32)                 # (n_out, 1) column

    grid = (n_tiles,)
    cparams = pltpu.CompilerParams(dimension_semantics=("parallel",))

    # ---------------- pass 1: full-batch BN statistics ----------------
    partials = pl.pallas_call(
        functools.partial(_bn_stats_kernel, true_b=B, matmul_dtype=matmul_dtype),
        out_shape=jax.ShapeDtypeStruct((n_tiles, 1, 2 * d_hid), jnp.float32),
        grid=grid,
        in_specs=[
            pl.BlockSpec((tb, d_in), lambda i: (i, 0)),            # x tile (pipelined)
            pl.BlockSpec((d_in, d_hid), lambda i: (0, 0)),         # W1 resident
        ],
        out_specs=pl.BlockSpec((None, 1, 2 * d_hid), lambda i: (i, 0, 0)),
        compiler_params=cparams,
    )(x, w1m)

    sums = partials.reshape(n_tiles, 2 * d_hid).sum(axis=0)         # (2H,) f32
    mean = sums[:d_hid] / B                                         # true B divisor
    var = jnp.maximum(sums[d_hid:] / B - mean * mean, 0.0)          # biased var, f32
    scale = g1.reshape(1, d_hid).astype(jnp.float32) * jax.lax.rsqrt(var + BN_EPS)
    shift = b1.reshape(1, d_hid).astype(jnp.float32) - mean * scale

    # ---------------- pass 2: fused forward (transposed output) ----------------
    isz_x = jnp.dtype(x.dtype).itemsize
    isz_w = jnp.dtype(matmul_dtype).itemsize
    isz_o = jnp.dtype(out_dtype).itemsize
    flops = 2 * b_pad * (d_in * d_hid + d_hid * n_out)
    bytes_accessed = (b_pad * d_in * isz_x
                      + (d_in * d_hid + n_out * d_hid) * isz_w
                      + n_out * b_pad * isz_o)

    out_t = pl.pallas_call(
        functools.partial(_linnet_fwd_kernel, matmul_dtype=matmul_dtype),
        out_shape=jax.ShapeDtypeStruct((n_out, b_pad), out_dtype),
        grid=grid,
        in_specs=[
            pl.BlockSpec((tb, d_in), lambda i: (i, 0)),            # x tile (pipelined)
            pl.BlockSpec((d_in, d_hid), lambda i: (0, 0)),         # W1 resident
            pl.BlockSpec((1, d_hid), lambda i: (0, 0)),            # BN scale resident
            pl.BlockSpec((1, d_hid), lambda i: (0, 0)),            # BN shift resident
            pl.BlockSpec((n_out, d_hid), lambda i: (0, 0)),        # W2^T resident
            pl.BlockSpec((n_out, 1), lambda i: (0, 0)),            # b2 column resident
        ],
        out_specs=pl.BlockSpec((n_out, tb), lambda i: (0, i)),     # lane-dense, 40 B/row
        compiler_params=cparams,
        cost_estimate=pl.CostEstimate(flops=flops, transcendentals=0,
                                      bytes_accessed=bytes_accessed),
    )(x, w1m, scale, shift, w2t, b2c)

    # Tiny (n_out, B) -> (B, n_out) transpose in XLA; garbage tail columns dropped.
    return out_t[:, :B].T


def init_params(key, d_in=32, d_hidden=64, d_out=10):
    """PyTorch-style init: Linear ~ U(-1/sqrt(fan_in), .), BN gamma=1, beta=0."""
    k1, k2, k3 = jax.random.split(key, 3)
    bnd1 = 1.0 / jnp.sqrt(d_in)
    bnd2 = 1.0 / jnp.sqrt(d_hidden)
    w1 = jax.random.uniform(k1, (d_in, d_hidden), jnp.float32, -bnd1, bnd1)   # (in, out)
    g1 = jnp.ones((1, d_hidden), jnp.float32)                                 # BN gamma
    b1 = jnp.zeros((1, d_hidden), jnp.float32)                                # BN beta
    w2 = jax.random.uniform(k2, (d_hidden, d_out), jnp.float32, -bnd2, bnd2)  # (in, out)
    b2 = jax.random.uniform(k3, (1, d_out), jnp.float32, -bnd2, bnd2)         # Linear bias
    return w1, g1, b1, w2, b2


def reference_forward(x, w1, g1, b1, w2, b2):
    """Pure-JAX reference of the same forward pass (training-mode BN)."""
    h = x @ w1
    mean = jnp.mean(h, axis=0, keepdims=True)
    var = jnp.mean((h - mean) ** 2, axis=0, keepdims=True)
    h = (h - mean) / jnp.sqrt(var + BN_EPS) * g1 + b1
    h = jnp.maximum(h, 0.0)
    return jnp.maximum(h @ w2 + b2, 0.0)


if __name__ == "__main__":
    key = jax.random.PRNGKey(0)
    k_x, k_p = jax.random.split(key)

    # Small but non-trivial: 200 rows, tile of 128 -> 2 batch tiles, the second
    # ragged (72 valid rows), exercising multi-tile grid + in-kernel tail masking
    # + the two-pass BN statistics + transposed output writeback.
    B, D_IN, D_HID, D_OUT = 200, 32, 64, 10
    x = jax.random.normal(k_x, (B, D_IN), jnp.float32)
    params = init_params(k_p, D_IN, D_HID, D_OUT)

    # f32 path: correctness gate against the pure-JAX reference.
    out = jax.block_until_ready(linnet_forward(x, *params, tb=128))
    ref = reference_forward(x, *params)
    assert out.shape == (B, D_OUT)
    assert jnp.allclose(out, ref, atol=1e-3, rtol=1e-3), \
        float(jnp.max(jnp.abs(out - ref)))

    # Default-tile path with bf16 matmul operands / bf16 output
    # (recommended on v5e, v6e and v7x): smoke test.
    out_bf16 = jax.block_until_ready(
        linnet_forward(x, *params,
                       matmul_dtype=jnp.bfloat16, out_dtype=jnp.bfloat16))
    assert out_bf16.shape == (B, D_OUT)
    assert bool(jnp.all(jnp.isfinite(out_bf16.astype(jnp.float32))))

    print("KERNEL_OK")
</pallas_src>

<mosaic_0001>
module attributes {stable_mosaic.version = 11 : i64} {
  func.func @_bn_stats_kernel(%arg0: i32, %arg1: memref<128x32xf32, #tpu.memory_space<vmem>>, %arg2: memref<32x64xf32, #tpu.memory_space<vmem>>, %arg3: memref<1x1x128xf32, #tpu.memory_space<vmem>>) attributes {dimension_semantics = [#tpu.dimension_semantics<parallel>], iteration_bounds = array<i64: 2>, scalar_prefetch = 0 : i64, scratch_operands = 0 : i64, tpu.core_type = #tpu.core_type<tc>, window_params = [{transform_indices = @transform_0, window_bounds = array<i64: 128, 32>}, {pipeline_mode = #tpu.pipeline_mode<synchronous>, transform_indices = @transform_1, window_bounds = array<i64: 32, 64>}, {transform_indices = @transform_2, window_bounds = array<i64: 1, 1, 128>}]} {
    %0 = tpu.iota {dimensions = array<i32: 0>} : vector<128x32xi32>
    %c128_i32 = arith.constant 128 : i32
    %1 = arith.muli %arg0, %c128_i32 : i32
    %2 = vector.broadcast %1 : i32 to vector<128x32xi32>
    %3 = arith.addi %0, %2 : vector<128x32xi32>
    %c200_i32 = arith.constant 200 : i32
    %4 = vector.broadcast %c200_i32 : i32 to vector<128x32xi32>
    %5 = arith.cmpi slt, %3, %4 : vector<128x32xi32>
    %c0 = arith.constant 0 : index
    %c0_0 = arith.constant 0 : index
    %6 = vector.load %arg1[%c0, %c0_0] : memref<128x32xf32, #tpu.memory_space<vmem>>, vector<128x32xf32>
    %cst = arith.constant 0.000000e+00 : f32
    %7 = vector.broadcast %cst : f32 to vector<128x32xf32>
    %8 = arith.select %5, %6, %7 : vector<128x32xi1>, vector<128x32xf32>
    %c0_1 = arith.constant 0 : index
    %c0_2 = arith.constant 0 : index
    %9 = vector.load %arg2[%c0_1, %c0_2] : memref<32x64xf32, #tpu.memory_space<vmem>>, vector<32x64xf32>
    %cst_3 = arith.constant dense<0.000000e+00> : vector<128x64xf32>
    %10 = tpu.matmul %8, %9, %cst_3 {dimension_numbers = #tpu.dot_dimension_numbers<[1], [0], [0], [1], [0, 0, 1, 1], [], []>} : vector<128x32xf32>, vector<32x64xf32>, vector<128x64xf32> -> vector<128x64xf32>
    %11 = arith.mulf %10, %10 : vector<128x64xf32>
    %12 = tpu.concatenate %10, %11 in 1 : vector<128x64xf32>, vector<128x64xf32> -> vector<128x128xf32>
    %cst_4 = arith.constant dense<0.000000e+00> : vector<128xf32>
    %13 = vector.multi_reduction <add>, %12, %cst_4 [0] : vector<128x128xf32> to vector<128xf32>
    %14 = vector.shape_cast %13 : vector<128xf32> to vector<1x128xf32>
    %c0_5 = arith.constant 0 : index
    %c0_6 = arith.constant 0 : index
    %c0_7 = arith.constant 0 : index
    %15 = vector.load %arg3[%c0_5, %c0_6, %c0_7] : memref<1x1x128xf32, #tpu.memory_space<vmem>>, vector<1x1x128xf32>
    %16 = vector.shape_cast %15 : vector<1x1x128xf32> to vector<1x128xf32>
    %17 = vector.shape_cast %14 : vector<1x128xf32> to vector<1x1x128xf32>
    tpu.vector_store %arg3[%c0_5, %c0_6, %c0_7], %17 {strides = array<i32>} : memref<1x1x128xf32, #tpu.memory_space<vmem>>, vector<1x1x128xf32>,
    return
  }
  func.func @transform_0(%arg0: i32) -> (i32, i32) {
    %c0_i32 = arith.constant 0 : i32
    %c0_i32_0 = arith.constant 0 : i32
    return %arg0, %c0_i32 : i32, i32
  }
  func.func @transform_1(%arg0: i32) -> (i32, i32) {
    %c0_i32 = arith.constant 0 : i32
    %c0_i32_0 = arith.constant 0 : i32
    %c0_i32_1 = arith.constant 0 : i32
    return %c0_i32, %c0_i32_0 : i32, i32
  }
  func.func @transform_2(%arg0: i32) -> (i32, i32, i32) {
    %c0_i32 = arith.constant 0 : i32
    %c0_i32_0 = arith.constant 0 : i32
    %c0_i32_1 = arith.constant 0 : i32
    return %arg0, %c0_i32, %c0_i32_0 : i32, i32, i32
  }
}

module attributes {stable_mosaic.version = 11 : i64} {
  func.func @_linnet_fwd_kernel(%arg0: i32, %arg1: memref<128x32xf32, #tpu.memory_space<vmem>>, %arg2: memref<32x64xf32, #tpu.memory_space<vmem>>, %arg3: memref<1x64xf32, #tpu.memory_space<vmem>>, %arg4: memref<1x64xf32, #tpu.memory_space<vmem>>, %arg5: memref<10x64xf32, #tpu.memory_space<vmem>>, %arg6: memref<10x1xf32, #tpu.memory_space<vmem>>, %arg7: memref<10x128xf32, #tpu.memory_space<vmem>>) attributes {dimension_semantics = [#tpu.dimension_semantics<parallel>], iteration_bounds = array<i64: 2>, scalar_prefetch = 0 : i64, scratch_operands = 0 : i64, tpu.core_type = #tpu.core_type<tc>, window_params = [{transform_indices = @transform_0, window_bounds = array<i64: 128, 32>}, {pipeline_mode = #tpu.pipeline_mode<synchronous>, transform_indices = @transform_1, window_bounds = array<i64: 32, 64>}, {pipeline_mode = #tpu.pipeline_mode<synchronous>, transform_indices = @transform_2, window_bounds = array<i64: 1, 64>}, {pipeline_mode = #tpu.pipeline_mode<synchronous>, transform_indices = @transform_3, window_bounds = array<i64: 1, 64>}, {pipeline_mode = #tpu.pipeline_mode<synchronous>, transform_indices = @transform_4, window_bounds = array<i64: 10, 64>}, {pipeline_mode = #tpu.pipeline_mode<synchronous>, transform_indices = @transform_5, window_bounds = array<i64: 10, 1>}, {transform_indices = @transform_6, window_bounds = array<i64: 10, 128>}]} {
    %c0 = arith.constant 0 : index
    %c0_0 = arith.constant 0 : index
    %0 = vector.load %arg1[%c0, %c0_0] : memref<128x32xf32, #tpu.memory_space<vmem>>, vector<128x32xf32>
    %c0_1 = arith.constant 0 : index
    %c0_2 = arith.constant 0 : index
    %1 = vector.load %arg2[%c0_1, %c0_2] : memref<32x64xf32, #tpu.memory_space<vmem>>, vector<32x64xf32>
    %cst = arith.constant dense<0.000000e+00> : vector<128x64xf32>
    %2 = tpu.matmul %0, %1, %cst {dimension_numbers = #tpu.dot_dimension_numbers<[1], [0], [0], [1], [0, 0, 1, 1], [], []>} : vector<128x32xf32>, vector<32x64xf32>, vector<128x64xf32> -> vector<128x64xf32>
    %c0_3 = arith.constant 0 : index
    %c0_4 = arith.constant 0 : index
    %3 = vector.load %arg3[%c0_3, %c0_4] : memref<1x64xf32, #tpu.memory_space<vmem>>, vector<1x64xf32>
    %4 = vector.broadcast %3 : vector<1x64xf32> to vector<128x64xf32>
    %5 = arith.mulf %2, %4 : vector<128x64xf32>
    %c0_5 = arith.constant 0 : index
    %c0_6 = arith.constant 0 : index
    %6 = vector.load %arg4[%c0_5, %c0_6] : memref<1x64xf32, #tpu.memory_space<vmem>>, vector<1x64xf32>
    %7 = vector.broadcast %6 : vector<1x64xf32> to vector<128x64xf32>
    %8 = arith.addf %5, %7 : vector<128x64xf32>
    %cst_7 = arith.constant 0.000000e+00 : f32
    %9 = vector.broadcast %cst_7 : f32 to vector<128x64xf32>
    %10 = arith.maximumf %8, %9 : vector<128x64xf32>
    %c0_8 = arith.constant 0 : index
    %c0_9 = arith.constant 0 : index
    %11 = vector.load %arg5[%c0_8, %c0_9] : memref<10x64xf32, #tpu.memory_space<vmem>>, vector<10x64xf32>
    %12 = tpu.transpose %10, [1, 0] : vector<128x64xf32> -> vector<64x128xf32>
    %cst_10 = arith.constant dense<0.000000e+00> : vector<10x128xf32>
    %13 = tpu.matmul %11, %12, %cst_10 {dimension_numbers = #tpu.dot_dimension_numbers<[1], [0], [0], [1], [0, 0, 1, 1], [], []>} : vector<10x64xf32>, vector<64x128xf32>, vector<10x128xf32> -> vector<10x128xf32>
    %c0_11 = arith.constant 0 : index
    %c0_12 = arith.constant 0 : index
    %14 = vector.load %arg6[%c0_11, %c0_12] : memref<10x1xf32, #tpu.memory_space<vmem>>, vector<10x1xf32>
    %15 = vector.broadcast %14 : vector<10x1xf32> to vector<10x128xf32>
    %16 = arith.addf %13, %15 : vector<10x128xf32>
    %cst_13 = arith.constant 0.000000e+00 : f32
    %17 = vector.broadcast %cst_13 : f32 to vector<10x128xf32>
    %18 = arith.maximumf %16, %17 : vector<10x128xf32>
    %c0_14 = arith.constant 0 : index
    %c0_15 = arith.constant 0 : index
    %19 = vector.load %arg7[%c0_14, %c0_15] : memref<10x128xf32, #tpu.memory_space<vmem>>, vector<10x128xf32>
    tpu.vector_store %arg7[%c0_14, %c0_15], %18 {strides = array<i32>} : memref<10x128xf32, #tpu.memory_space<vmem>>, vector<10x128xf32>,
    return
  }
  func.func @transform_0(%arg0: i32) -> (i32, i32) {
    %c0_i32 = arith.constant 0 : i32
    %c0_i32_0 = arith.constant 0 : i32
    return %arg0, %c0_i32 : i32, i32
  }
  func.func @transform_1(%arg0: i32) -> (i32, i32) {
    %c0_i32 = arith.constant 0 : i32
    %c0_i32_0 = arith.constant 0 : i32
    %c0_i32_1 = arith.constant 0 : i32
    return %c0_i32, %c0_i32_0 : i32, i32
  }
  func.func @transform_2(%arg0: i32) -> (i32, i32) {
    %c0_i32 = arith.constant 0 : i32
    %c0_i32_0 = arith.constant 0 : i32
    %c0_i32_1 = arith.constant 0 : i32
    return %c0_i32, %c0_i32_0 : i32, i32
  }
  func.func @transform_3(%arg0: i32) -> (i32, i32) {
    %c0_i32 = arith.constant 0 : i32
    %c0_i32_0 = arith.constant 0 : i32
    %c0_i32_1 = arith.constant 0 : i32
    return %c0_i32, %c0_i32_0 : i32, i32
  }
  func.func @transform_4(%arg0: i32) -> (i32, i32) {
    %c0_i32 = arith.constant 0 : i32
    %c0_i32_0 = arith.constant 0 : i32
    %c0_i32_1 = arith.constant 0 : i32
    return %c0_i32, %c0_i32_0 : i32, i32
  }
  func.func @transform_5(%arg0: i32) -> (i32, i32) {
    %c0_i32 = arith.constant 0 : i32
    %c0_i32_0 = arith.constant 0 : i32
    %c0_i32_1 = arith.constant 0 : i32
    return %c0_i32, %c0_i32_0 : i32, i32
  }
  func.func @transform_6(%arg0: i32) -> (i32, i32) {
    %c0_i32 = arith.constant 0 : i32
    %c0_i32_0 = arith.constant 0 : i32
    return %c0_i32, %arg0 : i32, i32
  }
}

</mosaic_0001>

<llo_original>
// kernel: linnet_forward.2
$region0: #{linnet_forward.2}
  #allocation0 [shape = 'u32[]', space=smem, size = 0x4, offset = 0x4, fixed_abs, tag = 'smem constant byte address 0x4 - core index']
  #allocation1 [shape = 'u32[144,128]{1,0:T(1,128)}', space=vmem, size = 0x12000, scoped, tag = 'internal scratch']
  %s0 = inlined_call_operand.vmem [shape: f32[200,32], index: 0, kind: input, shape index: {}]
  %s1 = inlined_call_operand.vmem [shape: f32[32,64], index: 1, kind: input, shape index: {}]
  %s2 = inlined_call_operand.vmem [shape: f32[2,1,128], index: 2, kind: output, shape index: {}]
  %s3 = sld [smem:[#allocation0]]
  $region41: #{linnet_forward.2} parent=0
    _
  %s5 = ssub.s32 1, %s3
  %s6 = scalar_select 0, %s5, %s3
  loop: start=0, step=1, limit=4
  $region2: #{linnet_forward.2} parent=0 // loop_pre_header
    _
  $region3: #{linnet_forward.2} parent=0 // loop_header
    %s8 = sphi 0, %s12
    %p9 = scmp.ge.s32.totalorder %s8, 4
    %s18 = sphi 0, %s20
    %s21 = sphi 0, %s18
    %s22 = sphi 0, %s21
    %s38 = sphi 0, %s22
    %s42 = sphi 0, %s42
    %s44 = sphi 0, %s42
    %s45 = sphi 0, %s44
    %s59 = sphi 0, %s45
    %s65 = sphi 0, %s67
    %s68 = sphi 0, %s65
    %s69 = sphi 0, %s68
    %s85 = sphi 0, %s69
  $region4: #{linnet_forward.2} parent=0 // loop_header_branch
    %11 = sbr.rel (%p9) target = $region8
  $region5: #{linnet_forward.2} parent=0 // loop_body
    %s13 = ssub.s32 %s8, 1
    %s14 = ssub.s32 %s8, 2
    %s15 = sadd.s32 %s8, 1
    %s16 = ssub.s32 %s8, %s15
    %p17 = scmp.eq.s32.totalorder %s16, 0
    %s19 = sadd.s32 %s18, 1
    %s20 = scalar_select %p17, %s18, %s19
    %p23 = pneg %p17
    %p24 = scmp.eq.s32.totalorder %s8, 1
    %p25 = por %p23, %p24
    %p26 = scmp.ne.s32.totalorder %s18, %s21
    %p27 = scmp.eq.s32.totalorder %s8, 0
    %p28 = por %p26, %p27
    %p29 = scmp.ne.s32.totalorder %s18, %s21
    %p30 = scmp.eq.s32.totalorder %s13, 1
    %p31 = por %p29, %p30
    %p32 = scmp.ne.s32.totalorder %s21, %s22
    %p33 = scmp.eq.s32.totalorder %s13, 0
    %p34 = por %p32, %p33
    %p35 = scmp.ne.s32.totalorder %s21, %s22
    %p36 = scmp.eq.s32.totalorder %s14, 1
    %p37 = por %p35, %p36
    %p39 = scmp.ne.s32.totalorder %s22, %s38
    %p40 = scmp.eq.s32.totalorder %s14, 0
    %p41 = por %p39, %p40
    %s43 = sadd.s32 %s42, 1
    %p46 = scmp.eq.s32.totalorder %s8, 1
    %p47 = scmp.ne.s32.totalorder %s42, %s44
    %p48 = scmp.eq.s32.totalorder %s8, 0
    %p49 = por %p47, %p48
    %p50 = scmp.ne.s32.totalorder %s42, %s44
    %p51 = scmp.eq.s32.totalorder %s13, 1
    %p52 = por %p50, %p51
    %p53 = scmp.ne.s32.totalorder %s44, %s45
    %p54 = scmp.eq.s32.totalorder %s13, 0
    %p55 = por %p53, %p54
    %p56 = scmp.ne.s32.totalorder %s44, %s45
    %p57 = scmp.eq.s32.totalorder %s14, 1
    %p58 = por %p56, %p57
    %p60 = scmp.ne.s32.totalorder %s45, %s59
    %p61 = scmp.eq.s32.totalorder %s14, 0
    %p62 = por %p60, %p61
    %s63 = ssub.s32 %s8, %s15
    %p64 = scmp.eq.s32.totalorder %s63, 0
    %s66 = sadd.s32 %s65, 1
    %s67 = scalar_select %p64, %s65, %s66
    %p70 = pneg %p64
    %p71 = scmp.eq.s32.totalorder %s8, 1
    %p72 = por %p70, %p71
    %p73 = scmp.ne.s32.totalorder %s65, %s68
    %p74 = scmp.eq.s32.totalorder %s8, 0
    %p75 = por %p73, %p74
    %p76 = scmp.ne.s32.totalorder %s65, %s68
    %p77 = scmp.eq.s32.totalorder %s13, 1
    %p78 = por %p76, %p77
    %p79 = scmp.ne.s32.totalorder %s68, %s69
    %p80 = scmp.eq.s32.totalorder %s13, 0
    %p81 = por %p79, %p80
    %p82 = scmp.ne.s32.totalorder %s68, %s69
    %p83 = scmp.eq.s32.totalorder %s14, 1
    %p84 = por %p82, %p83
    %p86 = scmp.ne.s32.totalorder %s69, %s85
    %p87 = scmp.eq.s32.totalorder %s14, 0
    %p88 = por %p86, %p87
    %p89 = scmp.le.s32.totalorder 1, %s8
    %p90 = scmp.lt.s32.totalorder %s8, 3
    %p91 = pnand %p89, %p90
    %p92 = pneg %p91
    // Predicated region
    $region9: #{linnet_forward.2} parent=5 // pred_check
      _
    $region10: #{linnet_forward.2} parent=5 // pred_check_branch
      %94 = sbr.rel (%p91) target = $region12
    $region11: #{linnet_forward.2} parent=5 // pred_region
      %s95 = ssub.s32 %s8, 1
      // Predicated region
      $region13: #{linnet_forward.2} parent=11 // pred_check
        %p96 = pneg %p55
      $region14: #{linnet_forward.2} parent=11 // pred_check_branch
        %98 = sbr.rel (%p96) target = $region16
      $region15: #{linnet_forward.2} parent=11 // pred_region
        _
      $region16: #{linnet_forward.2} parent=11 // pred_fallthru
        _
    $region12: #{linnet_forward.2} parent=5 // pred_fallthru
      _
    %p99 = scmp.lt.s32.totalorder %s8, 2
    // Predicated region
    $region17: #{linnet_forward.2} parent=5 // pred_check
      %p100 = pneg %p99
    $region18: #{linnet_forward.2} parent=5 // pred_check_branch
      %102 = sbr.rel (%p100) target = $region20
    $region19: #{linnet_forward.2} parent=5 // pred_region
      // Predicated region
      $region21: #{linnet_forward.2} parent=19 // pred_check
        %p103 = pneg %p28
      $region22: #{linnet_forward.2} parent=19 // pred_check_branch
        %105 = sbr.rel (%p103) target = $region24
      $region23: #{linnet_forward.2} parent=19 // pred_region
        %s106 = smul.u32 16, %s8
        %s107 = ssub.s32 25, %s106
        %p108 = scmp.lt.s32.totalorder %s107, 16
        %s109 = scalar_select %p108, %s107, 16
        %s110 = smul.u32 128, %s109
        %p111 = scmp.lt.s32.totalorder %s106, 24
        %s112 = scalar_select %p111, %s106, 24
        %s113 = smul.addr %s112, 8
        %s114 = scalar_lea.vmem %s0, %s113
        %s115 = smul.u32 16, %s8
        %s116 = ssub.s32 25, %s115
        %p117 = scmp.lt.s32.totalorder %s116, 16
        %s118 = scalar_select %p117, %s116, 16
        %s119 = smul.u32 128, %s118
      $region24: #{linnet_forward.2} parent=19 // pred_fallthru
        _
    $region20: #{linnet_forward.2} parent=5 // pred_fallthru
      _
    %p120 = scmp.le.s32.totalorder 1, %s8
    %p121 = scmp.lt.s32.totalorder %s8, 3
    %p122 = pnand %p120, %p121
    %p123 = pneg %p122
    // Predicated region
    $region25: #{linnet_forward.2} parent=5 // pred_check
      _
    $region26: #{linnet_forward.2} parent=5 // pred_check_branch
      %125 = sbr.rel (%p122) target = $region28
    $region27: #{linnet_forward.2} parent=5 // pred_region
      %s126 = ssub.s32 %s8, 1
      %s127 = smul.u32 16, %s13
      %s128 = ssub.s32 25, %s127
      %p129 = scmp.lt.s32.totalorder %s128, 16
      %s130 = scalar_select %p129, %s128, 16
      %s131 = smul.u32 128, %s130
      %p132 = scmp.lt.s32.totalorder %s127, 24
      %s133 = scalar_select %p132, %s127, 24
      %s134 = smul.addr %s133, 8
      %s135 = scalar_lea.vmem %s0, %s134
      %p136 = pneg %p34
      %p137 = pneg %p31
      %p138 = pneg %p55
      %p139 = pneg %p52
      %p140 = pneg %p81
      %p141 = pneg %p78
      %p142 = scmp.lt.s32.totalorder %s13, 1
      %s143 = scalar_select %p142, %s13, 1
      %s144 = scalar_lea.vmem %s2, %s143
      %s145 = smul.u32 16, %s13
      %s146 = ssub.s32 25, %s145
      %p147 = scmp.lt.s32.totalorder %s146, 16
      %s148 = scalar_select %p147, %s146, 16
      %s149 = smul.u32 128, %s148
      %p150 = scmp.lt.s32.totalorder %s145, 24
      %s151 = scalar_select %p150, %s145, 24
      %s152 = smul.addr %s151, 8
      %s153 = scalar_lea.vmem %s0, %s152
      %s154 = smul.u32 16, %s13
      %s155 = ssub.s32 25, %s154
      %p156 = scmp.lt.s32.totalorder %s155, 16
      %s157 = scalar_select %p156, %s155, 16
      %s158 = smul.u32 128, %s157
      %p159 = scmp.lt.s32.totalorder %s13, 1
      %s160 = scalar_select %p159, %s13, 1
      %s161 = scalar_lea.vmem %s2, %s160
      %v162 = vlaneseq
      %v163 = vshrl.u32 %v162, 7
      %v164 = vadd.s32 %v163, 8
      %v165 = vadd.s32 %v163, 16
      %v166 = vadd.s32 %v163, 24
      %v167 = vadd.s32 %v163, 32
      %v168 = vadd.s32 %v163, 40
      %v169 = vadd.s32 %v163, 48
      %v170 = vadd.s32 %v163, 56
      %v171 = vadd.s32 %v163, 64
      %v172 = vadd.s32 %v163, 72
      %v173 = vadd.s32 %v163, 80
      %v174 = vadd.s32 %v163, 88
      %v175 = vadd.s32 %v163, 96
      %v176 = vadd.s32 %v163, 104
      %v177 = vadd.s32 %v163, 112
      %v178 = vadd.s32 %v163, 120
      %s179 = smul.u32 %s13, 128
      %v180 = vstv %s179
      %v181 = vadd.s32 %v163, %v180
      %v182 = vadd.s32 %v164, %v180
      %v183 = vadd.s32 %v165, %v180
      %v184 = vadd.s32 %v166, %v180
      %v185 = vadd.s32 %v167, %v180
      %v186 = vadd.s32 %v168, %v180
      %v187 = vadd.s32 %v169, %v180
      %v188 = vadd.s32 %v170, %v180
      %v189 = vadd.s32 %v171, %v180
      %v190 = vadd.s32 %v172, %v180
      %v191 = vadd.s32 %v173, %v180
      %v192 = vadd.s32 %v174, %v180
      %v193 = vadd.s32 %v175, %v180
      %v194 = vadd.s32 %v176, %v180
      %v195 = vadd.s32 %v177, %v180
      %v196 = vadd.s32 %v178, %v180
      %vm197 = vcmp.lt.s32.totalorder %v181, 200
      %vm198 = vcmp.lt.s32.totalorder %v182, 200
      %vm199 = vcmp.lt.s32.totalorder %v183, 200
      %vm200 = vcmp.lt.s32.totalorder %v184, 200
      %vm201 = vcmp.lt.s32.totalorder %v185, 200
      %vm202 = vcmp.lt.s32.totalorder %v186, 200
      %vm203 = vcmp.lt.s32.totalorder %v187, 200
      %vm204 = vcmp.lt.s32.totalorder %v188, 200
      %vm205 = vcmp.lt.s32.totalorder %v189, 200
      %vm206 = vcmp.lt.s32.totalorder %v190, 200
      %vm207 = vcmp.lt.s32.totalorder %v191, 200
      %vm208 = vcmp.lt.s32.totalorder %v192, 200
      %vm209 = vcmp.lt.s32.totalorder %v193, 200
      %vm210 = vcmp.lt.s32.totalorder %v194, 200
      %vm211 = vcmp.lt.s32.totalorder %v195, 200
      %vm212 = vcmp.lt.s32.totalorder %v196, 200
      %v213 = vld [vmem:[%s153] sm:$0xff]
      %v214 = vld [vmem:[%s153 + $0x8] sm:$0xff]
      %v215 = vld [vmem:[%s153 + $0x10] sm:$0xff]
      %v216 = vld [vmem:[%s153 + $0x18] sm:$0xff]
      %v217 = vld [vmem:[%s153 + $0x20] sm:$0xff]
      %v218 = vld [vmem:[%s153 + $0x28] sm:$0xff]
      %v219 = vld [vmem:[%s153 + $0x30] sm:$0xff]
      %v220 = vld [vmem:[%s153 + $0x38] sm:$0xff]
      %v221 = vld [vmem:[%s153 + $0x40] sm:$0xff]
      %v222 = vld [vmem:[%s153 + $0x48] sm:$0xff]
      %v223 = vld [vmem:[%s153 + $0x50] sm:$0xff]
      %v224 = vld [vmem:[%s153 + $0x58] sm:$0xff]
      %v225 = vld [vmem:[%s153 + $0x60] sm:$0xff]
      %v226 = vld [vmem:[%s153 + $0x68] sm:$0xff]
      %v227 = vld [vmem:[%s153 + $0x70] sm:$0xff]
      %v228 = vld [vmem:[%s153 + $0x78] sm:$0xff]
      %v229 = vsel %vm197, %v213, 0.0
      %v230 = vsel %vm198, %v214, 0.0
      %v231 = vsel %vm199, %v215, 0.0
      %v232 = vsel %vm200, %v216, 0.0
      %v233 = vsel %vm201, %v217, 0.0
      %v234 = vsel %vm202, %v218, 0.0
      %v235 = vsel %vm203, %v219, 0.0
      %v236 = vsel %vm204, %v220, 0.0
      %v237 = vsel %vm205, %v221, 0.0
      %v238 = vsel %vm206, %v222, 0.0
      %v239 = vsel %vm207, %v223, 0.0
      %v240 = vsel %vm208, %v224, 0.0
      %v241 = vsel %vm209, %v225, 0.0
      %v242 = vsel %vm210, %v226, 0.0
      %v243 = vsel %vm211, %v227, 0.0
      %v244 = vsel %vm212, %v228, 0.0
      %v245 = vld [vmem:[%s1] sm:$0xff]
      %v246 = vld [vmem:[%s1 + $0x8] sm:$0xff]
      %v247 = vld [vmem:[%s1 + $0x10] sm:$0xff]
      %v248 = vld [vmem:[%s1 + $0x18] sm:$0xff]
      %vm249 = vcmask 261120
      %v251 = vsel %vm249, %v229, 0
      %v254 = vsel %vm249, %v230, 0
      %v257 = vsel %vm249, %v231, 0
      %v260 = vsel %vm249, %v232, 0
      %v263 = vsel %vm249, %v233, 0
      %v266 = vsel %vm249, %v234, 0
      %v269 = vsel %vm249, %v235, 0
      %v272 = vsel %vm249, %v236, 0
      %v275 = vsel %vm249, %v237, 0
      %v278 = vsel %vm249, %v238, 0
      %v281 = vsel %vm249, %v239, 0
      %v284 = vsel %vm249, %v240, 0
      %v287 = vsel %vm249, %v241, 0
      %v290 = vsel %vm249, %v242, 0
      %v293 = vsel %vm249, %v243, 0
      %v296 = vsel %vm249, %v244, 0
      %298 = vmatprep.subr.mxu0 0.0
      %299 = vmatpush1.msra.mxu0 %v245
      %300 = vmatprep.subr.mxu0 0.0
      %301 = vmatpush1.msra.mxu0 %v246
      %302 = vmatprep.subr.mxu0 0.0
      %303 = vmatpush1.msra.mxu0 %v247
      %304 = vmatprep.subr.mxu0 0.0
      %305 = vmatpush1.msra.mxu0 %v248
      %306 = vmatprep.subr.mxu0 0.0
      %307 = vmatpush1.msra.mxu0 0.0
      %308 = vmatprep.subr.mxu0 0.0
      %309 = vmatpush1.msra.mxu0 0.0
      %310 = vmatprep.subr.mxu0 0.0
      %311 = vmatpush1.msra.mxu0 0.0
      %312 = vmatprep.subr.mxu0 0.0
      %313 = vmatpush1.msra.mxu0 0.0
      %314 = vmatprep.subr.mxu0 0.0
      %315 = vmatpush1.msra.mxu0 0.0
      %316 = vmatprep.subr.mxu0 0.0
      %317 = vmatpush1.msra.mxu0 0.0
      %318 = vmatprep.subr.mxu0 0.0
      %319 = vmatpush1.msra.mxu0 0.0
      %320 = vmatprep.subr.mxu0 0.0
      %321 = vmatpush1.msra.mxu0 0.0
      %322 = vmatprep.subr.mxu0 0.0
      %323 = vmatpush1.msra.mxu0 0.0
      %324 = vmatprep.subr.mxu0 0.0
      %325 = vmatpush1.msra.mxu0 0.0
      %326 = vmatprep.subr.mxu0 0.0
      %327 = vmatpush1.msra.mxu0 0.0
      %328 = vmatprep.subr.mxu0 0.0
      %329 = vmatpush1.msra.mxu0 0.0
      %330 = vmatprep.subr.mxu0 0.0
      %331 = vmatpush1.msra.mxu0 0.0
      %332 = vmatprep.subr.mxu0 0.0
      %333 = vmatpush1.msra.mxu0 0.0
      %334 = vmatprep.subr.mxu0 0.0
      %335 = vmatpush1.msra.mxu0 0.0
      %336 = vmatprep.subr.mxu0 0.0
      %337 = vmatpush1.msra.mxu0 0.0
      %338 = vmatprep.subr.mxu0 0.0
      %339 = vmatpush1.msra.mxu0 0.0
      %340 = vmatprep.subr.mxu0 0.0
      %341 = vmatpush1.msra.mxu0 0.0
      %342 = vmatprep.subr.mxu0 0.0
      %343 = vmatpush1.msra.mxu0 0.0
      %344 = vmatprep.subr.mxu0 0.0
      %345 = vmatpush1.msra.mxu0 0.0
      %346 = vmatprep.subr.mxu0 0.0
      %347 = vmatpush1.msra.mxu0 0.0
      %348 = vmatprep.subr.mxu0 0.0
      %349 = vmatpush1.msra.mxu0 0.0
      %350 = vmatprep.subr.mxu0 0.0
      %351 = vmatpush1.msra.mxu0 0.0
      %352 = vmatprep.subr.mxu0 0.0
      %353 = vmatpush1.msra.mxu0 0.0
      %354 = vmatprep.subr.mxu0 0.0
      %355 = vmatpush1.msra.mxu0 0.0
      %356 = vmatprep.subr.mxu0 0.0
      %357 = vmatpush1.msra.mxu0 0.0
      %358 = vmatprep.subr.mxu0 0.0
      %359 = vmatpush1.msra.mxu0 0.0
      %360 = vmatprep.subr.mxu0 0.0
      %361 = vmatpush1.msra.mxu0 0.0
      %362 = vmatprep.mubr.f32.mxu0 0.0
      %363 = vmatmul.mubr.f32.gmra.mrb[0].mxu0 %v251
      %v364 = vpop.f32.mrb[0].mxu0
      %v365 = vadd.f32 0.0, %v364
      %v366 = vpop.f32.mrb[0].mxu0
      %367 = vmatprep.mubr.f32.mxu0 0.0
      %368 = vmatmul.mubr.f32.gmra.mrb[0].mxu0 %v254
      %v369 = vpop.f32.mrb[0].mxu0
      %v370 = vadd.f32 0.0, %v369
      %v371 = vpop.f32.mrb[0].mxu0
      %372 = vmatprep.mubr.f32.mxu0 0.0
      %373 = vmatmul.mubr.f32.gmra.mrb[0].mxu0 %v257
      %v374 = vpop.f32.mrb[0].mxu0
      %v375 = vadd.f32 0.0, %v374
      %v376 = vpop.f32.mrb[0].mxu0
      %377 = vmatprep.mubr.f32.mxu0 0.0
      %378 = vmatmul.mubr.f32.gmra.mrb[0].mxu0 %v260
      %v379 = vpop.f32.mrb[0].mxu0
      %v380 = vadd.f32 0.0, %v379
      %v381 = vpop.f32.mrb[0].mxu0
      %382 = vmatprep.mubr.f32.mxu0 0.0
      %383 = vmatmul.mubr.f32.gmra.mrb[0].mxu0 %v263
      %v384 = vpop.f32.mrb[0].mxu0
      %v385 = vadd.f32 0.0, %v384
      %v386 = vpop.f32.mrb[0].mxu0
      %387 = vmatprep.mubr.f32.mxu0 0.0
      %388 = vmatmul.mubr.f32.gmra.mrb[0].mxu0 %v266
      %v389 = vpop.f32.mrb[0].mxu0
      %v390 = vadd.f32 0.0, %v389
      %v391 = vpop.f32.mrb[0].mxu0
      %392 = vmatprep.mubr.f32.mxu0 0.0
      %393 = vmatmul.mubr.f32.gmra.mrb[0].mxu0 %v269
      %v394 = vpop.f32.mrb[0].mxu0
      %v395 = vadd.f32 0.0, %v394
      %v396 = vpop.f32.mrb[0].mxu0
      %397 = vmatprep.mubr.f32.mxu0 0.0
      %398 = vmatmul.mubr.f32.gmra.mrb[0].mxu0 %v272
      %v399 = vpop.f32.mrb[0].mxu0
      %v400 = vadd.f32 0.0, %v399
      %v401 = vpop.f32.mrb[0].mxu0
      %402 = vmatprep.mubr.f32.mxu0 0.0
      %403 = vmatmul.mubr.f32.gmra.mrb[0].mxu0 %v275
      %v404 = vpop.f32.mrb[0].mxu0
      %v405 = vadd.f32 0.0, %v404
      %v406 = vpop.f32.mrb[0].mxu0
      %407 = vmatprep.mubr.f32.mxu0 0.0
      %408 = vmatmul.mubr.f32.gmra.mrb[0].mxu0 %v278
      %v409 = vpop.f32.mrb[0].mxu0
      %v410 = vadd.f32 0.0, %v409
      %v411 = vpop.f32.mrb[0].mxu0
      %412 = vmatprep.mubr.f32.mxu0 0.0
      %413 = vmatmul.mubr.f32.gmra.mrb[0].mxu0 %v281
      %v414 = vpop.f32.mrb[0].mxu0
      %v415 = vadd.f32 0.0, %v414
      %v416 = vpop.f32.mrb[0].mxu0
      %417 = vmatprep.mubr.f32.mxu0 0.0
      %418 = vmatmul.mubr.f32.gmra.mrb[0].mxu0 %v284
      %v419 = vpop.f32.mrb[0].mxu0
      %v420 = vadd.f32 0.0, %v419
      %v421 = vpop.f32.mrb[0].mxu0
      %422 = vmatprep.mubr.f32.mxu0 0.0
      %423 = vmatmul.mubr.f32.gmra.mrb[0].mxu0 %v287
      %v424 = vpop.f32.mrb[0].mxu0
      %v425 = vadd.f32 0.0, %v424
      %v426 = vpop.f32.mrb[0].mxu0
      %427 = vmatprep.mubr.f32.mxu0 0.0
      %428 = vmatmul.mubr.f32.gmra.mrb[0].mxu0 %v290
      %v429 = vpop.f32.mrb[0].mxu0
      %v430 = vadd.f32 0.0, %v429
      %v431 = vpop.f32.mrb[0].mxu0
      %432 = vmatprep.mubr.f32.mxu0 0.0
      %433 = vmatmul.mubr.f32.gmra.mrb[0].mxu0 %v293
      %v434 = vpop.f32.mrb[0].mxu0
      %v435 = vadd.f32 0.0, %v434
      %v436 = vpop.f32.mrb[0].mxu0
      %437 = vmatprep.mubr.f32.mxu0 0.0
      %438 = vmatmul.mubr.f32.gmra.mrb[0].mxu0 %v296
      %v439 = vpop.f32.mrb[0].mxu0
      %v440 = vadd.f32 0.0, %v439
      %v441 = vpop.f32.mrb[0].mxu0
      %442 = vdwg.mxu0
      %v443 = vmul.f32 %v365, %v365
      %v444 = vmul.f32 %v370, %v370
      %v445 = vmul.f32 %v375, %v375
      %v446 = vmul.f32 %v380, %v380
      %v447 = vmul.f32 %v385, %v385
      %v448 = vmul.f32 %v390, %v390
      %v449 = vmul.f32 %v395, %v395
      %v450 = vmul.f32 %v400, %v400
      %v451 = vmul.f32 %v405, %v405
      %v452 = vmul.f32 %v410, %v410
      %v453 = vmul.f32 %v415, %v415
      %v454 = vmul.f32 %v420, %v420
      %v455 = vmul.f32 %v425, %v425
      %v456 = vmul.f32 %v430, %v430
      %v457 = vmul.f32 %v435, %v435
      %v458 = vmul.f32 %v440, %v440
      %475 = vrot.lane.b32.xlu0 %v443, 64
      %v476 = vpop.permute.xlu0 %475
      %477 = vrot.lane.b32.xlu0 %v444, 64
      %v478 = vpop.permute.xlu0 %477
      %479 = vrot.lane.b32.xlu0 %v445, 64
      %v480 = vpop.permute.xlu0 %479
      %481 = vrot.lane.b32.xlu0 %v446, 64
      %v482 = vpop.permute.xlu0 %481
      %483 = vrot.lane.b32.xlu0 %v447, 64
      %v484 = vpop.permute.xlu0 %483
      %485 = vrot.lane.b32.xlu0 %v448, 64
      %v486 = vpop.permute.xlu0 %485
      %487 = vrot.lane.b32.xlu0 %v449, 64
      %v488 = vpop.permute.xlu0 %487
      %489 = vrot.lane.b32.xlu0 %v450, 64
      %v490 = vpop.permute.xlu0 %489
      %491 = vrot.lane.b32.xlu0 %v451, 64
      %v492 = vpop.permute.xlu0 %491
      %493 = vrot.lane.b32.xlu0 %v452, 64
      %v494 = vpop.permute.xlu0 %493
      %495 = vrot.lane.b32.xlu0 %v453, 64
      %v496 = vpop.permute.xlu0 %495
      %497 = vrot.lane.b32.xlu0 %v454, 64
      %v498 = vpop.permute.xlu0 %497
      %499 = vrot.lane.b32.xlu0 %v455, 64
      %v500 = vpop.permute.xlu0 %499
      %501 = vrot.lane.b32.xlu0 %v456, 64
      %v502 = vpop.permute.xlu0 %501
      %503 = vrot.lane.b32.xlu0 %v457, 64
      %v504 = vpop.permute.xlu0 %503
      %505 = vrot.lane.b32.xlu0 %v458, 64
      %v506 = vpop.permute.xlu0 %505
      %vm523 = vcmask 523264
      %v524 = vsel %vm523, %v365, %v476
      %v525 = vsel %vm523, %v370, %v478
      %v526 = vsel %vm523, %v375, %v480
      %v527 = vsel %vm523, %v380, %v482
      %v528 = vsel %vm523, %v385, %v484
      %v529 = vsel %vm523, %v390, %v486
      %v530 = vsel %vm523, %v395, %v488
      %v531 = vsel %vm523, %v400, %v490
      %v532 = vsel %vm523, %v405, %v492
      %v533 = vsel %vm523, %v410, %v494
      %v534 = vsel %vm523, %v415, %v496
      %v535 = vsel %vm523, %v420, %v498
      %v536 = vsel %vm523, %v425, %v500
      %v537 = vsel %vm523, %v430, %v502
      %v538 = vsel %vm523, %v435, %v504
      %v539 = vsel %vm523, %v440, %v506
      %v540 = vadd.f32 %v524, %v525
      %v541 = vadd.f32 %v540, %v526
      %v542 = vadd.f32 %v541, %v527
      %v543 = vadd.f32 %v542, %v528
      %v544 = vadd.f32 %v543, %v529
      %v545 = vadd.f32 %v544, %v530
      %v546 = vadd.f32 %v545, %v531
      %v547 = vadd.f32 %v546, %v532
      %v548 = vadd.f32 %v547, %v533
      %v549 = vadd.f32 %v548, %v534
      %v550 = vadd.f32 %v549, %v535
      %v551 = vadd.f32 %v550, %v536
      %v552 = vadd.f32 %v551, %v537
      %v553 = vadd.f32 %v552, %v538
      %v554 = vadd.f32 %v553, %v539
      %v555 = vrot.slane %v554, 4
      %v556 = vadd.f32 %v554, %v555
      %v557 = vrot.slane %v556, 2
      %v558 = vadd.f32 %v556, %v557
      %v559 = vrot.slane %v558, 1
      %v560 = vadd.f32 %v558, %v559
      %561 = vst [vmem:[%s161] sm:$0x1] %v560
      %p562 = scmp.lt.s32.totalorder %s13, 1
      %s563 = scalar_select %p562, %s13, 1
      %s564 = scalar_lea.vmem %s2, %s563
      // Predicated region
      $region29: #{linnet_forward.2} parent=27 // pred_check
        %p565 = pneg %p78
      $region30: #{linnet_forward.2} parent=27 // pred_check_branch
        %567 = sbr.rel (%p565) target = $region32
      $region31: #{linnet_forward.2} parent=27 // pred_region
        _
      $region32: #{linnet_forward.2} parent=27 // pred_fallthru
        _
    $region28: #{linnet_forward.2} parent=5 // pred_fallthru
      _
    %p568 = scmp.le.s32.totalorder 2, %s8
    // Predicated region
    $region33: #{linnet_forward.2} parent=5 // pred_check
      %p569 = pneg %p568
    $region34: #{linnet_forward.2} parent=5 // pred_check_branch
      %571 = sbr.rel (%p569) target = $region36
    $region35: #{linnet_forward.2} parent=5 // pred_region
      %s572 = ssub.s32 %s8, 2
      // Predicated region
      $region37: #{linnet_forward.2} parent=35 // pred_check
        %p573 = pneg %p84
      $region38: #{linnet_forward.2} parent=35 // pred_check_branch
        %575 = sbr.rel (%p573) target = $region40
      $region39: #{linnet_forward.2} parent=35 // pred_region
        %p576 = scmp.lt.s32.totalorder %s14, 1
        %s577 = scalar_select %p576, %s14, 1
        %s578 = scalar_lea.vmem %s2, %s577
      $region40: #{linnet_forward.2} parent=35 // pred_fallthru
        _
    $region36: #{linnet_forward.2} parent=5 // pred_fallthru
      _
  $region6: #{linnet_forward.2} parent=0 // loop_footer
    %s12 = sadd.s32 1, %s8
  $region7: #{linnet_forward.2} parent=0 // loop_footer_branch
    %7 = sbr.rel target = $region3
  $region8: #{linnet_forward.2} parent=0 // loop_exit
    _

// kernel: linnet_forward.3
$region0: #{linnet_forward.3}
  #allocation0 [shape = 'u32[]', space=smem, size = 0x4, offset = 0x4, fixed_abs, tag = 'smem constant byte address 0x4 - core index']
  #allocation1 [shape = 'u32[144,128]{1,0:T(1,128)}', space=vmem, size = 0x12000, scoped, tag = 'internal scratch']
  %s0 = inlined_call_operand.vmem [shape: f32[200,32], index: 0, kind: input, shape index: {}]
  %s1 = inlined_call_operand.vmem [shape: f32[32,64], index: 1, kind: input, shape index: {}]
  %s2 = inlined_call_operand.vmem [shape: f32[1,64], index: 2, kind: input, shape index: {}]
  %s3 = inlined_call_operand.vmem [shape: f32[1,64], index: 3, kind: input, shape index: {}]
  %s4 = inlined_call_operand.vmem [shape: f32[10,64], index: 4, kind: input, shape index: {}]
  %s5 = inlined_call_operand.vmem [shape: f32[10,1], index: 5, kind: input, shape index: {}]
  %s6 = inlined_call_operand.vmem [shape: f32[10,256], index: 6, kind: output, shape index: {}]
  %s7 = sld [smem:[#allocation0]]
  $region91: #{linnet_forward.3} parent=0
    _
  %s9 = ssub.s32 1, %s7
  %s10 = scalar_select 0, %s9, %s7
  $region1: #{linnet_forward.3} parent=0
    #allocation2 [shape = 'u8[16384]{0}', space=vmem, size = 0x4000, scoped, tag = 'output window, operand 0']
    loop: start=0, step=1, limit=4
    $region2: #{linnet_forward.3} parent=1 // loop_pre_header
      _
    $region3: #{linnet_forward.3} parent=1 // loop_header
      %s12 = sphi 0, %s16
      %p13 = scmp.ge.s32.totalorder %s12, 4
      %s22 = sphi 0, %s24
      %s25 = sphi 0, %s22
      %s26 = sphi 0, %s25
      %s42 = sphi 0, %s26
      %s46 = sphi 0, %s46
      %s48 = sphi 0, %s46
      %s49 = sphi 0, %s48
      %s63 = sphi 0, %s49
      %s67 = sphi 0, %s67
      %s69 = sphi 0, %s67
      %s70 = sphi 0, %s69
      %s84 = sphi 0, %s70
      %s88 = sphi 0, %s88
      %s90 = sphi 0, %s88
      %s91 = sphi 0, %s90
      %s105 = sphi 0, %s91
      %s109 = sphi 0, %s109
      %s111 = sphi 0, %s109
      %s112 = sphi 0, %s111
      %s126 = sphi 0, %s112
      %s130 = sphi 0, %s130
      %s132 = sphi 0, %s130
      %s133 = sphi 0, %s132
      %s147 = sphi 0, %s133
      %s153 = sphi 0, %s155
      %s156 = sphi 0, %s153
      %s157 = sphi 0, %s156
      %s173 = sphi 0, %s157
    $region4: #{linnet_forward.3} parent=1 // loop_header_branch
      %15 = sbr.rel (%p13) target = $region8
    $region5: #{linnet_forward.3} parent=1 // loop_body
      %s17 = ssub.s32 %s12, 1
      %s18 = ssub.s32 %s12, 2
      %s19 = sadd.s32 %s12, 1
      %s20 = ssub.s32 %s12, %s19
      %p21 = scmp.eq.s32.totalorder %s20, 0
      %s23 = sadd.s32 %s22, 1
      %s24 = scalar_select %p21, %s22, %s23
      %p27 = pneg %p21
      %p28 = scmp.eq.s32.totalorder %s12, 1
      %p29 = por %p27, %p28
      %p30 = scmp.ne.s32.totalorder %s22, %s25
      %p31 = scmp.eq.s32.totalorder %s12, 0
      %p32 = por %p30, %p31
      %p33 = scmp.ne.s32.totalorder %s22, %s25
      %p34 = scmp.eq.s32.totalorder %s17, 1
      %p35 = por %p33, %p34
      %p36 = scmp.ne.s32.totalorder %s25, %s26
      %p37 = scmp.eq.s32.totalorder %s17, 0
      %p38 = por %p36, %p37
      %p39 = scmp.ne.s32.totalorder %s25, %s26
      %p40 = scmp.eq.s32.totalorder %s18, 1
      %p41 = por %p39, %p40
      %p43 = scmp.ne.s32.totalorder %s26, %s42
      %p44 = scmp.eq.s32.totalorder %s18, 0
      %p45 = por %p43, %p44
      %s47 = sadd.s32 %s46, 1
      %p50 = scmp.eq.s32.totalorder %s12, 1
      %p51 = scmp.ne.s32.totalorder %s46, %s48
      %p52 = scmp.eq.s32.totalorder %s12, 0
      %p53 = por %p51, %p52
      %p54 = scmp.ne.s32.totalorder %s46, %s48
      %p55 = scmp.eq.s32.totalorder %s17, 1
      %p56 = por %p54, %p55
      %p57 = scmp.ne.s32.totalorder %s48, %s49
      %p58 = scmp.eq.s32.totalorder %s17, 0
      %p59 = por %p57, %p58
      %p60 = scmp.ne.s32.totalorder %s48, %s49
      %p61 = scmp.eq.s32.totalorder %s18, 1
      %p62 = por %p60, %p61
      %p64 = scmp.ne.s32.totalorder %s49, %s63
      %p65 = scmp.eq.s32.totalorder %s18, 0
      %p66 = por %p64, %p65
      %s68 = sadd.s32 %s67, 1
      %p71 = scmp.eq.s32.totalorder %s12, 1
      %p72 = scmp.ne.s32.totalorder %s67, %s69
      %p73 = scmp.eq.s32.totalorder %s12, 0
      %p74 = por %p72, %p73
      %p75 = scmp.ne.s32.totalorder %s67, %s69
      %p76 = scmp.eq.s32.totalorder %s17, 1
      %p77 = por %p75, %p76
      %p78 = scmp.ne.s32.totalorder %s69, %s70
      %p79 = scmp.eq.s32.totalorder %s17, 0
      %p80 = por %p78, %p79
      %p81 = scmp.ne.s32.totalorder %s69, %s70
      %p82 = scmp.eq.s32.totalorder %s18, 1
      %p83 = por %p81, %p82
      %p85 = scmp.ne.s32.totalorder %s70, %s84
      %p86 = scmp.eq.s32.totalorder %s18, 0
      %p87 = por %p85, %p86
      %s89 = sadd.s32 %s88, 1
      %p92 = scmp.eq.s32.totalorder %s12, 1
      %p93 = scmp.ne.s32.totalorder %s88, %s90
      %p94 = scmp.eq.s32.totalorder %s12, 0
      %p95 = por %p93, %p94
      %p96 = scmp.ne.s32.totalorder %s88, %s90
      %p97 = scmp.eq.s32.totalorder %s17, 1
      %p98 = por %p96, %p97
      %p99 = scmp.ne.s32.totalorder %s90, %s91
      %p100 = scmp.eq.s32.totalorder %s17, 0
      %p101 = por %p99, %p100
      %p102 = scmp.ne.s32.totalorder %s90, %s91
      %p103 = scmp.eq.s32.totalorder %s18, 1
      %p104 = por %p102, %p103
      %p106 = scmp.ne.s32.totalorder %s91, %s105
      %p107 = scmp.eq.s32.totalorder %s18, 0
      %p108 = por %p106, %p107
      %s110 = sadd.s32 %s109, 1
      %p113 = scmp.eq.s32.totalorder %s12, 1
      %p114 = scmp.ne.s32.totalorder %s109, %s111
      %p115 = scmp.eq.s32.totalorder %s12, 0
      %p116 = por %p114, %p115
      %p117 = scmp.ne.s32.totalorder %s109, %s111
      %p118 = scmp.eq.s32.totalorder %s17, 1
      %p119 = por %p117, %p118
      %p120 = scmp.ne.s32.totalorder %s111, %s112
      %p121 = scmp.eq.s32.totalorder %s17, 0
      %p122 = por %p120, %p121
      %p123 = scmp.ne.s32.totalorder %s111, %s112
      %p124 = scmp.eq.s32.totalorder %s18, 1
      %p125 = por %p123, %p124
      %p127 = scmp.ne.s32.totalorder %s112, %s126
      %p128 = scmp.eq.s32.totalorder %s18, 0
      %p129 = por %p127, %p128
      %s131 = sadd.s32 %s130, 1
      %p134 = scmp.eq.s32.totalorder %s12, 1
      %p135 = scmp.ne.s32.totalorder %s130, %s132
      %p136 = scmp.eq.s32.totalorder %s12, 0
      %p137 = por %p135, %p136
      %p138 = scmp.ne.s32.totalorder %s130, %s132
      %p139 = scmp.eq.s32.totalorder %s17, 1
      %p140 = por %p138, %p139
      %p141 = scmp.ne.s32.totalorder %s132, %s133
      %p142 = scmp.eq.s32.totalorder %s17, 0
      %p143 = por %p141, %p142
      %p144 = scmp.ne.s32.totalorder %s132, %s133
      %p145 = scmp.eq.s32.totalorder %s18, 1
      %p146 = por %p144, %p145
      %p148 = scmp.ne.s32.totalorder %s133, %s147
      %p149 = scmp.eq.s32.totalorder %s18, 0
      %p150 = por %p148, %p149
      %s151 = ssub.s32 %s12, %s19
      %p152 = scmp.eq.s32.totalorder %s151, 0
      %s154 = sadd.s32 %s153, 1
      %s155 = scalar_select %p152, %s153, %s154
      %p158 = pneg %p152
      %p159 = scmp.eq.s32.totalorder %s12, 1
      %p160 = por %p158, %p159
      %p161 = scmp.ne.s32.totalorder %s153, %s156
      %p162 = scmp.eq.s32.totalorder %s12, 0
      %p163 = por %p161, %p162
      %p164 = scmp.ne.s32.totalorder %s153, %s156
      %p165 = scmp.eq.s32.totalorder %s17, 1
      %p166 = por %p164, %p165
      %p167 = scmp.ne.s32.totalorder %s156, %s157
      %p168 = scmp.eq.s32.totalorder %s17, 0
      %p169 = por %p167, %p168
      %p170 = scmp.ne.s32.totalorder %s156, %s157
      %p171 = scmp.eq.s32.totalorder %s18, 1
      %p172 = por %p170, %p171
      %p174 = scmp.ne.s32.totalorder %s157, %s173
      %p175 = scmp.eq.s32.totalorder %s18, 0
      %p176 = por %p174, %p175
      %p177 = scmp.le.s32.totalorder 1, %s12
      %p178 = scmp.lt.s32.totalorder %s12, 3
      %p179 = pnand %p177, %p178
      %p180 = pneg %p179
      // Predicated region
      $region9: #{linnet_forward.3} parent=5 // pred_check
        _
      $region10: #{linnet_forward.3} parent=5 // pred_check_branch
        %182 = sbr.rel (%p179) target = $region12
      $region11: #{linnet_forward.3} parent=5 // pred_region
        %s183 = ssub.s32 %s12, 1
        // Predicated region
        $region13: #{linnet_forward.3} parent=11 // pred_check
          %p184 = pneg %p59
        $region14: #{linnet_forward.3} parent=11 // pred_check_branch
          %186 = sbr.rel (%p184) target = $region16
        $region15: #{linnet_forward.3} parent=11 // pred_region
          _
        $region16: #{linnet_forward.3} parent=11 // pred_fallthru
          _
        // Predicated region
        $region17: #{linnet_forward.3} parent=11 // pred_check
          %p187 = pneg %p80
        $region18: #{linnet_forward.3} parent=11 // pred_check_branch
          %189 = sbr.rel (%p187) target = $region20
        $region19: #{linnet_forward.3} parent=11 // pred_region
          _
        $region20: #{linnet_forward.3} parent=11 // pred_fallthru
          _
        // Predicated region
        $region21: #{linnet_forward.3} parent=11 // pred_check
          %p190 = pneg %p101
        $region22: #{linnet_forward.3} parent=11 // pred_check_branch
          %192 = sbr.rel (%p190) target = $region24
        $region23: #{linnet_forward.3} parent=11 // pred_region
          _
        $region24: #{linnet_forward.3} parent=11 // pred_fallthru
          _
        // Predicated region
        $region25: #{linnet_forward.3} parent=11 // pred_check
          %p193 = pneg %p122
        $region26: #{linnet_forward.3} parent=11 // pred_check_branch
          %195 = sbr.rel (%p193) target = $region28
        $region27: #{linnet_forward.3} parent=11 // pred_region
          _
        $region28: #{linnet_forward.3} parent=11 // pred_fallthru
          _
        // Predicated region
        $region29: #{linnet_forward.3} parent=11 // pred_check
          %p196 = pneg %p143
        $region30: #{linnet_forward.3} parent=11 // pred_check_branch
          %198 = sbr.rel (%p196) target = $region32
        $region31: #{linnet_forward.3} parent=11 // pred_region
          _
        $region32: #{linnet_forward.3} parent=11 // pred_fallthru
          _
      $region12: #{linnet_forward.3} parent=5 // pred_fallthru
        _
      %p199 = scmp.lt.s32.totalorder %s12, 2
      // Predicated region
      $region33: #{linnet_forward.3} parent=5 // pred_check
        %p200 = pneg %p199
      $region34: #{linnet_forward.3} parent=5 // pred_check_branch
        %202 = sbr.rel (%p200) target = $region36
      $region35: #{linnet_forward.3} parent=5 // pred_region
        // Predicated region
        $region37: #{linnet_forward.3} parent=35 // pred_check
          %p203 = pneg %p32
        $region38: #{linnet_forward.3} parent=35 // pred_check_branch
          %205 = sbr.rel (%p203) target = $region40
        $region39: #{linnet_forward.3} parent=35 // pred_region
          %s206 = smul.u32 16, %s12
          %s207 = ssub.s32 25, %s206
          %p208 = scmp.lt.s32.totalorder %s207, 16
          %s209 = scalar_select %p208, %s207, 16
          %s210 = smul.u32 128, %s209
          %p211 = scmp.lt.s32.totalorder %s206, 24
          %s212 = scalar_select %p211, %s206, 24
          %s213 = smul.addr %s212, 8
          %s214 = scalar_lea.vmem %s0, %s213
          %s215 = smul.u32 16, %s12
          %s216 = ssub.s32 25, %s215
          %p217 = scmp.lt.s32.totalorder %s216, 16
          %s218 = scalar_select %p217, %s216, 16
          %s219 = smul.u32 128, %s218
        $region40: #{linnet_forward.3} parent=35 // pred_fallthru
          _
      $region36: #{linnet_forward.3} parent=5 // pred_fallthru
        _
      %p220 = scmp.le.s32.totalorder 1, %s12
      %p221 = scmp.lt.s32.totalorder %s12, 3
      %p222 = pnand %p220, %p221
      %p223 = pneg %p222
      // Predicated region
      $region41: #{linnet_forward.3} parent=5 // pred_check
        _
      $region42: #{linnet_forward.3} parent=5 // pred_check_branch
        %225 = sbr.rel (%p222) target = $region44
      $region43: #{linnet_forward.3} parent=5 // pred_region
        %s226 = ssub.s32 %s12, 1
        %s227 = smul.u32 16, %s17
        %s228 = ssub.s32 25, %s227
        %p229 = scmp.lt.s32.totalorder %s228, 16
        %s230 = scalar_select %p229, %s228, 16
        %s231 = smul.u32 128, %s230
        %p232 = scmp.lt.s32.totalorder %s227, 24
        %s233 = scalar_select %p232, %s227, 24
        %s234 = smul.addr %s233, 8
        %s235 = scalar_lea.vmem %s0, %s234
        %p236 = pneg %p38
        %p237 = pneg %p35
        %p238 = pneg %p59
        %p239 = pneg %p56
        %p240 = pneg %p80
        %p241 = pneg %p77
        %p242 = pneg %p101
        %p243 = pneg %p98
        %p244 = pneg %p122
        %p245 = pneg %p119
        %p246 = pneg %p143
        %p247 = pneg %p140
        %p248 = pneg %p169
        %p249 = pneg %p166
        %s250 = sand.u32 %s156, 1
        %s251 = sand.u32 %s156, 1
        %s252 = smul.addr %s251, 16
        %s253 = scalar_lea.vmem [#allocation2], %s252
        %s254 = smul.u32 16, %s17
        %s255 = ssub.s32 25, %s254
        %p256 = scmp.lt.s32.totalorder %s255, 16
        %s257 = scalar_select %p256, %s255, 16
        %s258 = smul.u32 128, %s257
        %p259 = scmp.lt.s32.totalorder %s254, 24
        %s260 = scalar_select %p259, %s254, 24
        %s261 = smul.addr %s260, 8
        %s262 = scalar_lea.vmem %s0, %s261
        %s263 = smul.u32 16, %s17
        %s264 = ssub.s32 25, %s263
        %p265 = scmp.lt.s32.totalorder %s264, 16
        %s266 = scalar_select %p265, %s264, 16
        %s267 = smul.u32 128, %s266
        %v268 = vld [vmem:[%s262] sm:$0xff]
        %v269 = vld [vmem:[%s262 + $0x8] sm:$0xff]
        %v270 = vld [vmem:[%s262 + $0x10] sm:$0xff]
        %v271 = vld [vmem:[%s262 + $0x18] sm:$0xff]
        %v272 = vld [vmem:[%s262 + $0x20] sm:$0xff]
        %v273 = vld [vmem:[%s262 + $0x28] sm:$0xff]
        %v274 = vld [vmem:[%s262 + $0x30] sm:$0xff]
        %v275 = vld [vmem:[%s262 + $0x38] sm:$0xff]
        %v276 = vld [vmem:[%s262 + $0x40] sm:$0xff]
        %v277 = vld [vmem:[%s262 + $0x48] sm:$0xff]
        %v278 = vld [vmem:[%s262 + $0x50] sm:$0xff]
        %v279 = vld [vmem:[%s262 + $0x58] sm:$0xff]
        %v280 = vld [vmem:[%s262 + $0x60] sm:$0xff]
        %v281 = vld [vmem:[%s262 + $0x68] sm:$0xff]
        %v282 = vld [vmem:[%s262 + $0x70] sm:$0xff]
        %v283 = vld [vmem:[%s262 + $0x78] sm:$0xff]
        %v284 = vld [vmem:[%s1] sm:$0xff]
        %v285 = vld [vmem:[%s1 + $0x8] sm:$0xff]
        %v286 = vld [vmem:[%s1 + $0x10] sm:$0xff]
        %v287 = vld [vmem:[%s1 + $0x18] sm:$0xff]
        %vm288 = vcmask 261120
        %v290 = vsel %vm288, %v268, 0
        %v293 = vsel %vm288, %v269, 0
        %v296 = vsel %vm288, %v270, 0
        %v299 = vsel %vm288, %v271, 0
        %v302 = vsel %vm288, %v272, 0
        %v305 = vsel %vm288, %v273, 0
        %v308 = vsel %vm288, %v274, 0
        %v311 = vsel %vm288, %v275, 0
        %v314 = vsel %vm288, %v276, 0
        %v317 = vsel %vm288, %v277, 0
        %v320 = vsel %vm288, %v278, 0
        %v323 = vsel %vm288, %v279, 0
        %v326 = vsel %vm288, %v280, 0
        %v329 = vsel %vm288, %v281, 0
        %v332 = vsel %vm288, %v282, 0
        %v335 = vsel %vm288, %v283, 0
        %337 = vmatprep.subr.mxu0 0.0
        %338 = vmatpush1.msra.mxu0 %v284
        %339 = vmatprep.subr.mxu0 0.0
        %340 = vmatpush1.msra.mxu0 %v285
        %341 = vmatprep.subr.mxu0 0.0
        %342 = vmatpush1.msra.mxu0 %v286
        %343 = vmatprep.subr.mxu0 0.0
        %344 = vmatpush1.msra.mxu0 %v287
        %345 = vmatprep.subr.mxu0 0.0
        %346 = vmatpush1.msra.mxu0 0.0
        %347 = vmatprep.subr.mxu0 0.0
        %348 = vmatpush1.msra.mxu0 0.0
        %349 = vmatprep.subr.mxu0 0.0
        %350 = vmatpush1.msra.mxu0 0.0
        %351 = vmatprep.subr.mxu0 0.0
        %352 = vmatpush1.msra.mxu0 0.0
        %353 = vmatprep.subr.mxu0 0.0
        %354 = vmatpush1.msra.mxu0 0.0
        %355 = vmatprep.subr.mxu0 0.0
        %356 = vmatpush1.msra.mxu0 0.0
        %357 = vmatprep.subr.mxu0 0.0
        %358 = vmatpush1.msra.mxu0 0.0
        %359 = vmatprep.subr.mxu0 0.0
        %360 = vmatpush1.msra.mxu0 0.0
        %361 = vmatprep.subr.mxu0 0.0
        %362 = vmatpush1.msra.mxu0 0.0
        %363 = vmatprep.subr.mxu0 0.0
        %364 = vmatpush1.msra.mxu0 0.0
        %365 = vmatprep.subr.mxu0 0.0
        %366 = vmatpush1.msra.mxu0 0.0
        %367 = vmatprep.subr.mxu0 0.0
        %368 = vmatpush1.msra.mxu0 0.0
        %369 = vmatprep.subr.mxu0 0.0
        %370 = vmatpush1.msra.mxu0 0.0
        %371 = vmatprep.subr.mxu0 0.0
        %372 = vmatpush1.msra.mxu0 0.0
        %373 = vmatprep.subr.mxu0 0.0
        %374 = vmatpush1.msra.mxu0 0.0
        %375 = vmatprep.subr.mxu0 0.0
        %376 = vmatpush1.msra.mxu0 0.0
        %377 = vmatprep.subr.mxu0 0.0
        %378 = vmatpush1.msra.mxu0 0.0
        %379 = vmatprep.subr.mxu0 0.0
        %380 = vmatpush1.msra.mxu0 0.0
        %381 = vmatprep.subr.mxu0 0.0
        %382 = vmatpush1.msra.mxu0 0.0
        %383 = vmatprep.subr.mxu0 0.0
        %384 = vmatpush1.msra.mxu0 0.0
        %385 = vmatprep.subr.mxu0 0.0
        %386 = vmatpush1.msra.mxu0 0.0
        %387 = vmatprep.subr.mxu0 0.0
        %388 = vmatpush1.msra.mxu0 0.0
        %389 = vmatprep.subr.mxu0 0.0
        %390 = vmatpush1.msra.mxu0 0.0
        %391 = vmatprep.subr.mxu0 0.0
        %392 = vmatpush1.msra.mxu0 0.0
        %393 = vmatprep.subr.mxu0 0.0
        %394 = vmatpush1.msra.mxu0 0.0
        %395 = vmatprep.subr.mxu0 0.0
        %396 = vmatpush1.msra.mxu0 0.0
        %397 = vmatprep.subr.mxu0 0.0
        %398 = vmatpush1.msra.mxu0 0.0
        %399 = vmatprep.subr.mxu0 0.0
        %400 = vmatpush1.msra.mxu0 0.0
        %401 = vmatprep.mubr.f32.mxu0 0.0
        %402 = vmatmul.mubr.f32.gmra.mrb[0].mxu0 %v290
        %v403 = vpop.f32.mrb[0].mxu0
        %v404 = vadd.f32 0.0, %v403
        %v405 = vpop.f32.mrb[0].mxu0
        %406 = vmatprep.mubr.f32.mxu0 0.0
        %407 = vmatmul.mubr.f32.gmra.mrb[0].mxu0 %v293
        %v408 = vpop.f32.mrb[0].mxu0
        %v409 = vadd.f32 0.0, %v408
        %v410 = vpop.f32.mrb[0].mxu0
        %411 = vmatprep.mubr.f32.mxu0 0.0
        %412 = vmatmul.mubr.f32.gmra.mrb[0].mxu0 %v296
        %v413 = vpop.f32.mrb[0].mxu0
        %v414 = vadd.f32 0.0, %v413
        %v415 = vpop.f32.mrb[0].mxu0
        %416 = vmatprep.mubr.f32.mxu0 0.0
        %417 = vmatmul.mubr.f32.gmra.mrb[0].mxu0 %v299
        %v418 = vpop.f32.mrb[0].mxu0
        %v419 = vadd.f32 0.0, %v418
        %v420 = vpop.f32.mrb[0].mxu0
        %421 = vmatprep.mubr.f32.mxu0 0.0
        %422 = vmatmul.mubr.f32.gmra.mrb[0].mxu0 %v302
        %v423 = vpop.f32.mrb[0].mxu0
        %v424 = vadd.f32 0.0, %v423
        %v425 = vpop.f32.mrb[0].mxu0
        %426 = vmatprep.mubr.f32.mxu0 0.0
        %427 = vmatmul.mubr.f32.gmra.mrb[0].mxu0 %v305
        %v428 = vpop.f32.mrb[0].mxu0
        %v429 = vadd.f32 0.0, %v428
        %v430 = vpop.f32.mrb[0].mxu0
        %431 = vmatprep.mubr.f32.mxu0 0.0
        %432 = vmatmul.mubr.f32.gmra.mrb[0].mxu0 %v308
        %v433 = vpop.f32.mrb[0].mxu0
        %v434 = vadd.f32 0.0, %v433
        %v435 = vpop.f32.mrb[0].mxu0
        %436 = vmatprep.mubr.f32.mxu0 0.0
        %437 = vmatmul.mubr.f32.gmra.mrb[0].mxu0 %v311
        %v438 = vpop.f32.mrb[0].mxu0
        %v439 = vadd.f32 0.0, %v438
        %v440 = vpop.f32.mrb[0].mxu0
        %441 = vmatprep.mubr.f32.mxu0 0.0
        %442 = vmatmul.mubr.f32.gmra.mrb[0].mxu0 %v314
        %v443 = vpop.f32.mrb[0].mxu0
        %v444 = vadd.f32 0.0, %v443
        %v445 = vpop.f32.mrb[0].mxu0
        %446 = vmatprep.mubr.f32.mxu0 0.0
        %447 = vmatmul.mubr.f32.gmra.mrb[0].mxu0 %v317
        %v448 = vpop.f32.mrb[0].mxu0
        %v449 = vadd.f32 0.0, %v448
        %v450 = vpop.f32.mrb[0].mxu0
        %451 = vmatprep.mubr.f32.mxu0 0.0
        %452 = vmatmul.mubr.f32.gmra.mrb[0].mxu0 %v320
        %v453 = vpop.f32.mrb[0].mxu0
        %v454 = vadd.f32 0.0, %v453
        %v455 = vpop.f32.mrb[0].mxu0
        %456 = vmatprep.mubr.f32.mxu0 0.0
        %457 = vmatmul.mubr.f32.gmra.mrb[0].mxu0 %v323
        %v458 = vpop.f32.mrb[0].mxu0
        %v459 = vadd.f32 0.0, %v458
        %v460 = vpop.f32.mrb[0].mxu0
        %461 = vmatprep.mubr.f32.mxu0 0.0
        %462 = vmatmul.mubr.f32.gmra.mrb[0].mxu0 %v326
        %v463 = vpop.f32.mrb[0].mxu0
        %v464 = vadd.f32 0.0, %v463
        %v465 = vpop.f32.mrb[0].mxu0
        %466 = vmatprep.mubr.f32.mxu0 0.0
        %467 = vmatmul.mubr.f32.gmra.mrb[0].mxu0 %v329
        %v468 = vpop.f32.mrb[0].mxu0
        %v469 = vadd.f32 0.0, %v468
        %v470 = vpop.f32.mrb[0].mxu0
        %471 = vmatprep.mubr.f32.mxu0 0.0
        %472 = vmatmul.mubr.f32.gmra.mrb[0].mxu0 %v332
        %v473 = vpop.f32.mrb[0].mxu0
        %v474 = vadd.f32 0.0, %v473
        %v475 = vpop.f32.mrb[0].mxu0
        %476 = vmatprep.mubr.f32.mxu0 0.0
        %477 = vmatmul.mubr.f32.gmra.mrb[0].mxu0 %v335
        %v478 = vpop.f32.mrb[0].mxu0
        %v479 = vadd.f32 0.0, %v478
        %v480 = vpop.f32.mrb[0].mxu0
        %481 = vdwg.mxu0
        %v482 = vld [vmem:[%s2] sm:$0x1]
        %v484 = vlaneseq
        %v485 = vshrl.u32 %v484, 7
        %v486 = vsub.s32 0, %v485
        %v487 = vrot.slane %v482, %v486
        %v489 = vmul.f32 %v404, %v487
        %v490 = vmul.f32 %v409, %v487
        %v491 = vmul.f32 %v414, %v487
        %v492 = vmul.f32 %v419, %v487
        %v493 = vmul.f32 %v424, %v487
        %v494 = vmul.f32 %v429, %v487
        %v495 = vmul.f32 %v434, %v487
        %v496 = vmul.f32 %v439, %v487
        %v497 = vmul.f32 %v444, %v487
        %v498 = vmul.f32 %v449, %v487
        %v499 = vmul.f32 %v454, %v487
        %v500 = vmul.f32 %v459, %v487
        %v501 = vmul.f32 %v464, %v487
        %v502 = vmul.f32 %v469, %v487
        %v503 = vmul.f32 %v474, %v487
        %v504 = vmul.f32 %v479, %v487
        %v505 = vld [vmem:[%s3] sm:$0x1]
        %v507 = vlaneseq
        %v508 = vshrl.u32 %v507, 7
        %v509 = vsub.s32 0, %v508
        %v510 = vrot.slane %v505, %v509
        %v512 = vadd.f32 %v489, %v510
        %v513 = vadd.f32 %v490, %v510
        %v514 = vadd.f32 %v491, %v510
        %v515 = vadd.f32 %v492, %v510
        %v516 = vadd.f32 %v493, %v510
        %v517 = vadd.f32 %v494, %v510
        %v518 = vadd.f32 %v495, %v510
        %v519 = vadd.f32 %v496, %v510
        %v520 = vadd.f32 %v497, %v510
        %v521 = vadd.f32 %v498, %v510
        %v522 = vadd.f32 %v499, %v510
        %v523 = vadd.f32 %v500, %v510
        %v524 = vadd.f32 %v501, %v510
        %v525 = vadd.f32 %v502, %v510
        %v526 = vadd.f32 %v503, %v510
        %v527 = vadd.f32 %v504, %v510
        %v528 = vmax.f32 %v512, 0.0
        %v529 = vmax.f32 %v513, 0.0
        %v530 = vmax.f32 %v514, 0.0
        %v531 = vmax.f32 %v515, 0.0
        %v532 = vmax.f32 %v516, 0.0
        %v533 = vmax.f32 %v517, 0.0
        %v534 = vmax.f32 %v518, 0.0
        %v535 = vmax.f32 %v519, 0.0
        %v536 = vmax.f32 %v520, 0.0
        %v537 = vmax.f32 %v521, 0.0
        %v538 = vmax.f32 %v522, 0.0
        %v539 = vmax.f32 %v523, 0.0
        %v540 = vmax.f32 %v524, 0.0
        %v541 = vmax.f32 %v525, 0.0
        %v542 = vmax.f32 %v526, 0.0
        %v543 = vmax.f32 %v527, 0.0
        %v544 = vld [vmem:[%s4] sm:$0xff]
        %v545 = vld [vmem:[%s4 + $0x8] sm:$0x3]
        %v546 = vld [vmem:[%s5] sm:$0xff]
        %v547 = vld [vmem:[%s5 + $0x8] sm:$0x3]
        %549 = vset.pattern.permute.xlu0 0
        %550 = vperm.xlu0 %549, %v546
        %v551 = vpop.permute.xlu0 %550
        %554 = vset.pattern.permute.xlu0 0
        %555 = vperm.xlu0 %554, %v547
        %v556 = vpop.permute.xlu0 %555
        %vm558 = vcmask 523264
        %v560 = vsel %vm558, %v544, 0
        %v563 = vsel %vm558, %v545, 0
        %v566 = vsel %vm558, %v528, 0
        %v569 = vsel %vm558, %v529, 0
        %v572 = vsel %vm558, %v530, 0
        %v575 = vsel %vm558, %v531, 0
        %v578 = vsel %vm558, %v532, 0
        %v581 = vsel %vm558, %v533, 0
        %v584 = vsel %vm558, %v534, 0
        %v587 = vsel %vm558, %v535, 0
        %v590 = vsel %vm558, %v536, 0
        %v593 = vsel %vm558, %v537, 0
        %v596 = vsel %vm558, %v538, 0
        %v599 = vsel %vm558, %v539, 0
        %v602 = vsel %vm558, %v540, 0
        %v605 = vsel %vm558, %v541, 0
        %v608 = vsel %vm558, %v542, 0
        %v611 = vsel %vm558, %v543, 0
        %613 = vmatprep.subr.mxu0 0.0
        %614 = vmatpush1.xpose.msra.mxu0 %v566
        %615 = vmatprep.subr.mxu0 0.0
        %616 = vmatpush1.xpose.msra.mxu0 %v569
        %617 = vmatprep.subr.mxu0 0.0
        %618 = vmatpush1.xpose.msra.mxu0 %v572
        %619 = vmatprep.subr.mxu0 0.0
        %620 = vmatpush1.xpose.msra.mxu0 %v575
        %621 = vmatprep.subr.mxu0 0.0
        %622 = vmatpush1.xpose.msra.mxu0 %v578
        %623 = vmatprep.subr.mxu0 0.0
        %624 = vmatpush1.xpose.msra.mxu0 %v581
        %625 = vmatprep.subr.mxu0 0.0
        %626 = vmatpush1.xpose.msra.mxu0 %v584
        %627 = vmatprep.subr.mxu0 0.0
        %628 = vmatpush1.xpose.msra.mxu0 %v587
        %629 = vmatprep.subr.mxu0 0.0
        %630 = vmatpush1.xpose.msra.mxu0 %v590
        %631 = vmatprep.subr.mxu0 0.0
        %632 = vmatpush1.xpose.msra.mxu0 %v593
        %633 = vmatprep.subr.mxu0 0.0
        %634 = vmatpush1.xpose.msra.mxu0 %v596
        %635 = vmatprep.subr.mxu0 0.0
        %636 = vmatpush1.xpose.msra.mxu0 %v599
        %637 = vmatprep.subr.mxu0 0.0
        %638 = vmatpush1.xpose.msra.mxu0 %v602
        %639 = vmatprep.subr.mxu0 0.0
        %640 = vmatpush1.xpose.msra.mxu0 %v605
        %641 = vmatprep.subr.mxu0 0.0
        %642 = vmatpush1.xpose.msra.mxu0 %v608
        %643 = vmatprep.subr.mxu0 0.0
        %644 = vmatpush1.xpose.msra.mxu0 %v611
        %645 = vmatprep.subr.mxu0 0.0
        %646 = vmatpush1.xpose.msra.mxu0 0.0
        %647 = vmatprep.subr.mxu0 0.0
        %648 = vmatpush1.xpose.msra.mxu0 0.0
        %649 = vmatprep.subr.mxu0 0.0
        %650 = vmatpush1.xpose.msra.mxu0 0.0
        %651 = vmatprep.subr.mxu0 0.0
        %652 = vmatpush1.xpose.msra.mxu0 0.0
        %653 = vmatprep.subr.mxu0 0.0
        %654 = vmatpush1.xpose.msra.mxu0 0.0
        %655 = vmatprep.subr.mxu0 0.0
        %656 = vmatpush1.xpose.msra.mxu0 0.0
        %657 = vmatprep.subr.mxu0 0.0
        %658 = vmatpush1.xpose.msra.mxu0 0.0
        %659 = vmatprep.subr.mxu0 0.0
        %660 = vmatpush1.xpose.msra.mxu0 0.0
        %661 = vmatprep.subr.mxu0 0.0
        %662 = vmatpush1.xpose.msra.mxu0 0.0
        %663 = vmatprep.subr.mxu0 0.0
        %664 = vmatpush1.xpose.msra.mxu0 0.0
        %665 = vmatprep.subr.mxu0 0.0
        %666 = vmatpush1.xpose.msra.mxu0 0.0
        %667 = vmatprep.subr.mxu0 0.0
        %668 = vmatpush1.xpose.msra.mxu0 0.0
        %669 = vmatprep.subr.mxu0 0.0
        %670 = vmatpush1.xpose.msra.mxu0 0.0
        %671 = vmatprep.subr.mxu0 0.0
        %672 = vmatpush1.xpose.msra.mxu0 0.0
        %673 = vmatprep.subr.mxu0 0.0
        %674 = vmatpush1.xpose.msra.mxu0 0.0
        %675 = vmatprep.subr.mxu0 0.0
        %676 = vmatpush1.xpose.msra.mxu0 0.0
        %677 = vmatprep.mubr.f32.mxu0 0.0
        %678 = vmatmul.mubr.f32.gmra.mrb[0].mxu0 %v560
        %v679 = vpop.f32.mrb[0].mxu0
        %v680 = vadd.f32 %v551, %v679
        %v681 = vpop.f32.mrb[0].mxu0
        %682 = vmatprep.mubr.f32.mxu0 0.0
        %683 = vmatmul.mubr.f32.gmra.mrb[0].mxu0 %v563
        %v684 = vpop.f32.mrb[0].mxu0
        %v685 = vadd.f32 %v556, %v684
        %v686 = vpop.f32.mrb[0].mxu0
        %687 = vdwg.mxu0
        %v688 = vmax.f32 %v680, 0.0
        %v689 = vmax.f32 %v685, 0.0
        %690 = vst [vmem:[%s253] sm:$0xff] %v688
        %691 = vst [vmem:[%s253 + $0x8] sm:$0x3] %v689
        %s692 = sand.u32 %s156, 1
        %s693 = sand.u32 %s156, 1
        %s694 = smul.addr %s693, 16
        %s695 = scalar_lea.vmem [#allocation2], %s694
        // Predicated region
        $region45: #{linnet_forward.3} parent=43 // pred_check
          %p696 = pneg %p166
        $region46: #{linnet_forward.3} parent=43 // pred_check_branch
          %698 = sbr.rel (%p696) target = $region48
        $region47: #{linnet_forward.3} parent=43 // pred_region
          %s699 = smul.addr %s17, 8
          %s700 = scalar_lea.vmem %s6, %s699
          // Predicated region
          $region49: #{linnet_forward.3} parent=47 // pred_check
            _
          $region50: #{linnet_forward.3} parent=47 // pred_check_branch
            %702 = sbr.rel (0) target = $region52
          $region51: #{linnet_forward.3} parent=47 // pred_region
            // Predicated region
            $region53: #{linnet_forward.3} parent=51 // pred_check
              _
            $region54: #{linnet_forward.3} parent=51 // pred_check_branch
              %704 = sbr.rel (0) target = $region56
            $region55: #{linnet_forward.3} parent=51 // pred_region
              // Predicated region
              $region68: #{linnet_forward.3} parent=55 // pred_check
                _
              $region69: #{linnet_forward.3} parent=55 // pred_check_branch
                %721 = sbr.rel (0) target = $region71
              $region70: #{linnet_forward.3} parent=55 // pred_region
                loop: start=0, step=1, limit=1
                $region72: #{linnet_forward.3} parent=70 // loop_pre_header
                  _
                $region73: #{linnet_forward.3} parent=70 // loop_header
                  %s723 = sphi 0, %s727
                  %p724 = scmp.ge.s32.totalorder %s723, 1
                  %s728 = sphi %s695, %s695
                  %s729 = sphi %s700, %s700
                $region74: #{linnet_forward.3} parent=70 // loop_header_branch
                  %726 = sbr.rel (%p724) target = $region78
                $region75: #{linnet_forward.3} parent=70 // loop_body
                  %v730 = vld [vmem:[%s728] sm:$0xff]
                  %731 = vst [vmem:[%s729] sm:$0xff] %v730
                  %v732 = vld [vmem:[%s728 + $0x8] sm:$0xff]
                  %733 = vst [vmem:[%s729 + $0x10] sm:$0xff] %v732
                $region76: #{linnet_forward.3} parent=70 // loop_footer
                  %s727 = sadd.s32 1, %s723
                $region77: #{linnet_forward.3} parent=70 // loop_footer_branch
                  %722 = sbr.rel target = $region73
                $region78: #{linnet_forward.3} parent=70 // loop_exit
                  _
              $region71: #{linnet_forward.3} parent=55 // pred_fallthru
                _
              // Predicated region
              $region79: #{linnet_forward.3} parent=55 // pred_check
                _
              $region80: #{linnet_forward.3} parent=55 // pred_check_branch
                %735 = sbr.rel target = $region82
              $region81: #{linnet_forward.3} parent=55 // pred_region
                _
              $region82: #{linnet_forward.3} parent=55 // pred_fallthru
                _
            $region56: #{linnet_forward.3} parent=51 // pred_fallthru
              _
            // Predicated region
            $region57: #{linnet_forward.3} parent=51 // pred_check
              _
            $region58: #{linnet_forward.3} parent=51 // pred_check_branch
              %706 = sbr.rel target = $region60
            $region59: #{linnet_forward.3} parent=51 // pred_region
              loop: start=0, step=1, limit=1
              $region61: #{linnet_forward.3} parent=59 // loop_pre_header
                _
              $region62: #{linnet_forward.3} parent=59 // loop_header
                %s709 = sphi 0, %s713
                %p710 = scmp.ge.s32.totalorder %s709, 1
                %s714 = sphi %s695, %s695
                %s715 = sphi %s700, %s700
              $region63: #{linnet_forward.3} parent=59 // loop_header_branch
                %712 = sbr.rel (%p710) target = $region67
              $region64: #{linnet_forward.3} parent=59 // loop_body
                %v716 = vld [vmem:[%s714] sm:$0xff]
                %717 = vst [vmem:[%s715] sm:$0xff] %v716
                %v718 = vld [vmem:[%s714 + $0x8] sm:$0xff]
                %719 = vst [vmem:[%s715 + $0x10] sm:$0xff] %v718
              $region65: #{linnet_forward.3} parent=59 // loop_footer
                %s713 = sadd.s32 1, %s709
              $region66: #{linnet_forward.3} parent=59 // loop_footer_branch
                %708 = sbr.rel target = $region62
              $region67: #{linnet_forward.3} parent=59 // loop_exit
                _
            $region60: #{linnet_forward.3} parent=51 // pred_fallthru
              _
          $region52: #{linnet_forward.3} parent=47 // pred_fallthru
            _
          %736 = vnop
        $region48: #{linnet_forward.3} parent=43 // pred_fallthru
          _
      $region44: #{linnet_forward.3} parent=5 // pred_fallthru
        _
      %p737 = scmp.le.s32.totalorder 2, %s12
      // Predicated region
      $region83: #{linnet_forward.3} parent=5 // pred_check
        %p738 = pneg %p737
      $region84: #{linnet_forward.3} parent=5 // pred_check_branch
        %740 = sbr.rel (%p738) target = $region86
      $region85: #{linnet_forward.3} parent=5 // pred_region
        %s741 = ssub.s32 %s12, 2
        // Predicated region
        $region87: #{linnet_forward.3} parent=85 // pred_check
          %p742 = pneg %p172
        $region88: #{linnet_forward.3} parent=85 // pred_check_branch
          %744 = sbr.rel (%p742) target = $region90
        $region89: #{linnet_forward.3} parent=85 // pred_region
          %s745 = sand.u32 %s157, 1
          %s746 = sand.u32 %s157, 1
          %s747 = smul.addr %s746, 16
          %s748 = scalar_lea.vmem [#allocation2], %s747
        $region90: #{linnet_forward.3} parent=85 // pred_fallthru
          _
      $region86: #{linnet_forward.3} parent=5 // pred_fallthru
        _
    $region6: #{linnet_forward.3} parent=1 // loop_footer
      %s16 = sadd.s32 1, %s12
    $region7: #{linnet_forward.3} parent=1 // loop_footer_branch
      %11 = sbr.rel target = $region3
    $region8: #{linnet_forward.3} parent=1 // loop_exit
      _

</llo_original>
